<compile_context>
chip_gen: v5e
topology: v5e:2x2
jax: 0.10.0
libtpu: 0.0.40
codegen_flags: <defaults>
</compile_context>

<pallas_src>
import functools

import jax
import jax.numpy as jnp
from jax.experimental import pallas as pl
from jax.experimental.pallas import tpu as pltpu

# ---------------------------------------------------------------------------
# Model hyper-parameters (DIRECT_MODEL_SCALE is synthetic; not in the snippet).
# ---------------------------------------------------------------------------
DIRECT_MODEL_SCALE = 16            # "size"
NUM_AGENTS = 3                     # unused by forward(); kept for fidelity
MESSAGE_SIZE = 32
OBS_SIZE = 4

OUT_DIM = 2 + OBS_SIZE + OBS_SIZE                       # pos(2)+obs_agents+obs_targets = 10
HIDDEN = (8 * DIRECT_MODEL_SCALE, 4 * DIRECT_MODEL_SCALE,
          2 * DIRECT_MODEL_SCALE, 1 * DIRECT_MODEL_SCALE)   # (128, 64, 32, 16)
NUM_LAYERS = len(HIDDEN) + 1                            # 5 Linear layers

LANE = 128                         # TPU lane width; every feature dim padded to this
SUBLANE_ALIGN = 16                 # bf16 sublane packing -> batch tiles multiple of 16

# Packed weight-slab layout: layer 0 keeps the real message width as its input
# dim; every later layer's input dim is padded to LANE.  All offsets / sizes
# are multiples of 16 so static bf16 sub-slices stay tile aligned.
IN_DIMS_PAD = (MESSAGE_SIZE,) + (LANE,) * (NUM_LAYERS - 1)   # (32,128,128,128,128)
ROW_OFFS = [0]
for _d in IN_DIMS_PAD:
    ROW_OFFS.append(ROW_OFFS[-1] + _d)
W_SLAB_ROWS = ROW_OFFS[-1]         # 544
B_SLAB_ROWS = 8                    # 5 bias rows padded to one sublane tile

assert MESSAGE_SIZE % SUBLANE_ALIGN == 0
assert all(off % SUBLANE_ALIGN == 0 for off in ROW_OFFS)


def _round_up(x, m):
    return ((x + m - 1) // m) * m


def _cdiv(a, b):
    return -(-a // b)


# ---------------------------------------------------------------------------
# Kernel: 5 matmuls + 4 ReLUs on one (tb, .) batch tile; weights VMEM-resident.
# ---------------------------------------------------------------------------
def _mlp_kernel(x_ref, w_ref, b_ref, out_ref):
    b_all = b_ref[...]                                   # (8, 128) f32, one vreg
    h = x_ref[...]                                       # (tb, MESSAGE_SIZE) bf16
    for layer in range(NUM_LAYERS):                      # unrolled at trace time
        r0, r1 = ROW_OFFS[layer], ROW_OFFS[layer + 1]
        w = w_ref[r0:r1, :]                              # static (in_pad, 128) bf16 slice
        b = b_all[layer:layer + 1, :]                    # (1, 128) f32
        acc = jnp.dot(h, w, preferred_element_type=jnp.float32) + b   # f32 accumulate
        if layer < NUM_LAYERS - 1:
            acc = jnp.maximum(acc, 0.0)                  # ReLU in f32 (v5e-friendly)
            h = acc.astype(jnp.bfloat16)                 # bf16 operand for next matmul
        else:
            h = acc
    out_ref[...] = h.astype(out_ref.dtype)               # lane-dense (tb, 128) f32 store


# ---------------------------------------------------------------------------
# Parameters (synthetic, PyTorch-style uniform init) and slab packing.
# ---------------------------------------------------------------------------
def _init_params(key):
    dims = (MESSAGE_SIZE,) + HIDDEN + (OUT_DIM,)
    params = []
    for i in range(len(dims) - 1):
        fan_in, fan_out = dims[i], dims[i + 1]
        key, kw, kb = jax.random.split(key, 3)
        bound = 1.0 / float(fan_in) ** 0.5
        # Stored (in, out); equals the transpose of torch's (out, in) weight.
        w = jax.random.uniform(kw, (fan_in, fan_out), jnp.float32, -bound, bound)
        b = jax.random.uniform(kb, (fan_out,), jnp.float32, -bound, bound)
        params.append((w, b))
    return params


def pack_params(params):
    """Pack per-layer (w, b) into one zero-padded bf16 weight slab + f32 bias slab."""
    w_rows, b_rows = [], []
    for layer, (w, b) in enumerate(params):
        fan_in, fan_out = w.shape
        in_pad = IN_DIMS_PAD[layer]
        w_pad = jnp.zeros((in_pad, LANE), jnp.float32).at[:fan_in, :fan_out].set(w)
        b_pad = jnp.zeros((LANE,), jnp.float32).at[:fan_out].set(b)
        w_rows.append(w_pad)
        b_rows.append(b_pad)
    while len(b_rows) < B_SLAB_ROWS:
        b_rows.append(jnp.zeros((LANE,), jnp.float32))
    w_slab = jnp.concatenate(w_rows, axis=0).astype(jnp.bfloat16)   # (544, 128) bf16
    b_slab = jnp.stack(b_rows, axis=0)                              # (8, 128) f32
    return w_slab, b_slab


# ---------------------------------------------------------------------------
# Batch tiling + pallas_call wrapper.
# ---------------------------------------------------------------------------
def _pick_batch_tiling(batch, num_tiles, max_tile_rows):
    tiles = max(int(num_tiles), _cdiv(batch, max_tile_rows))
    tb = _round_up(_cdiv(batch, tiles), SUBLANE_ALIGN)
    padded_batch = _round_up(batch, tb)
    return tb, padded_batch


@functools.partial(jax.jit, static_argnames=("num_batch_tiles", "max_tile_rows"))
def direct_predictor_forward(message, w_slab, b_slab, *,
                             num_batch_tiles=1, max_tile_rows=1024):
    """Forward pass of DirectPredictor; returns the dict of output slices.

    num_batch_tiles: 1 on v5e/v6e (single TensorCore); 2 on v7x so the
    'parallel' grid axis actually feeds both TensorCores half-full tiles.
    """
    batch = message.shape[0]
    tb, padded_batch = _pick_batch_tiling(batch, num_batch_tiles, max_tile_rows)
    if padded_batch != batch:
        message = jnp.pad(message, ((0, padded_batch - batch), (0, 0)))
    x = message.astype(jnp.bfloat16)          # halve the input HBM->VMEM stream
    grid = (padded_batch // tb,)

    out_padded = pl.pallas_call(
        _mlp_kernel,
        out_shape=jax.ShapeDtypeStruct((padded_batch, LANE), jnp.float32),
        grid=grid,
        in_specs=[
            pl.BlockSpec((tb, MESSAGE_SIZE), lambda i: (i, 0)),
            pl.BlockSpec((W_SLAB_ROWS, LANE), lambda i: (0, 0)),   # VMEM-resident
            pl.BlockSpec((B_SLAB_ROWS, LANE), lambda i: (0, 0)),   # VMEM-resident
        ],
        out_specs=pl.BlockSpec((tb, LANE), lambda i: (i, 0)),
        compiler_params=pltpu.CompilerParams(
            dimension_semantics=("parallel",)),       # megacore split on v7x
    )(x, w_slab, b_slab)

    out = out_padded[:batch, :OUT_DIM]
    return {
        "pos": out[:, 0:2],
        "obs_agents": out[:, 2:2 + OBS_SIZE],
        "obs_targets": out[:, 2 + OBS_SIZE:OUT_DIM],
    }


# ---------------------------------------------------------------------------
# References.
# ---------------------------------------------------------------------------
def _split(h):
    return {
        "pos": h[:, 0:2],
        "obs_agents": h[:, 2:2 + OBS_SIZE],
        "obs_targets": h[:, 2 + OBS_SIZE:OUT_DIM],
    }


def _reference_forward_bf16(message, params):
    """Mirrors the kernel's math exactly (bf16 operands, f32 accumulate)."""
    h = message.astype(jnp.bfloat16)
    for i, (w, b) in enumerate(params):
        acc = jnp.dot(h, w.astype(jnp.bfloat16),
                      preferred_element_type=jnp.float32) + b
        if i < len(params) - 1:
            acc = jnp.maximum(acc, 0.0)
            h = acc.astype(jnp.bfloat16)
        else:
            h = acc
    return _split(h)


def _reference_forward_f32(message, params):
    """Full-precision spec reference (PyTorch f32 semantics)."""
    h = message
    for i, (w, b) in enumerate(params):
        h = jnp.dot(h, w, precision=jax.lax.Precision.HIGHEST) + b
        if i < len(params) - 1:
            h = jnp.maximum(h, 0.0)
    return _split(h)


# TODO(synk): compute_loss (MSELoss / CrossEntropyLoss) is a training-time
# helper, not part of the forward pass, and is intentionally not ported.

if __name__ == "__main__":
    key = jax.random.PRNGKey(0)
    key, kmsg = jax.random.split(key)
    params = _init_params(key)
    w_slab, b_slab = pack_params(params)

    def run_and_check(batch, num_tiles):
        msg = jax.random.normal(jax.random.fold_in(kmsg, batch),
                                (batch, MESSAGE_SIZE), jnp.float32)
        out = direct_predictor_forward(msg, w_slab, b_slab,
                                       num_batch_tiles=num_tiles)
        out = jax.tree_util.tree_map(jax.block_until_ready, out)
        ref_mx = _reference_forward_bf16(msg, params)   # same math as the kernel
        ref_fp = _reference_forward_f32(msg, params)    # spec-level sanity check
        for k in ("pos", "obs_agents", "obs_targets"):
            assert out[k].shape == ref_fp[k].shape, (k, out[k].shape, ref_fp[k].shape)
            assert jnp.allclose(out[k], ref_mx[k], atol=1e-4, rtol=1e-4), ("mxu", k)
            assert jnp.allclose(out[k], ref_fp[k], atol=5e-2, rtol=5e-2), ("f32", k)

    run_and_check(batch=12, num_tiles=1)   # 1 tile (v5e/v6e): 12 -> padded 16 rows
    run_and_check(batch=40, num_tiles=2)   # 2 parallel tiles (v7x megacore path)
    print("KERNEL_OK")
</pallas_src>

<mosaic_0001>
module attributes {stable_mosaic.version = 11 : i64} {
  func.func @_mlp_kernel(%arg0: i32, %arg1: memref<16x32xbf16, #tpu.memory_space<vmem>>, %arg2: memref<544x128xbf16, #tpu.memory_space<vmem>>, %arg3: memref<8x128xf32, #tpu.memory_space<vmem>>, %arg4: memref<16x128xf32, #tpu.memory_space<vmem>>) attributes {dimension_semantics = [#tpu.dimension_semantics<parallel>], iteration_bounds = array<i64: 1>, scalar_prefetch = 0 : i64, scratch_operands = 0 : i64, tpu.core_type = #tpu.core_type<tc>, window_params = [{transform_indices = @transform_0, window_bounds = array<i64: 16, 32>}, {pipeline_mode = #tpu.pipeline_mode<synchronous>, transform_indices = @transform_1, window_bounds = array<i64: 544, 128>}, {pipeline_mode = #tpu.pipeline_mode<synchronous>, transform_indices = @transform_2, window_bounds = array<i64: 8, 128>}, {transform_indices = @transform_3, window_bounds = array<i64: 16, 128>}]} {
    %c0 = arith.constant 0 : index
    %c0_0 = arith.constant 0 : index
    %0 = vector.load %arg3[%c0, %c0_0] : memref<8x128xf32, #tpu.memory_space<vmem>>, vector<8x128xf32>
    %c0_1 = arith.constant 0 : index
    %c0_2 = arith.constant 0 : index
    %1 = vector.load %arg1[%c0_1, %c0_2] : memref<16x32xbf16, #tpu.memory_space<vmem>>, vector<16x32xbf16>
    %c0_3 = arith.constant 0 : index
    %c0_4 = arith.constant 0 : index
    %2 = vector.load %arg2[%c0_3, %c0_4] : memref<544x128xbf16, #tpu.memory_space<vmem>>, vector<32x128xbf16>
    %3 = vector.extract_strided_slice %0 {offsets = [0, 0], sizes = [1, 128], strides = [1, 1]} : vector<8x128xf32> to vector<1x128xf32>
    %cst = arith.constant dense<0.000000e+00> : vector<16x128xf32>
    %4 = tpu.matmul %1, %2, %cst {dimension_numbers = #tpu.dot_dimension_numbers<[1], [0], [0], [1], [0, 0, 1, 1], [], []>} : vector<16x32xbf16>, vector<32x128xbf16>, vector<16x128xf32> -> vector<16x128xf32>
    %5 = vector.broadcast %3 : vector<1x128xf32> to vector<16x128xf32>
    %6 = arith.addf %4, %5 : vector<16x128xf32>
    %cst_5 = arith.constant 0.000000e+00 : f32
    %7 = vector.broadcast %cst_5 : f32 to vector<16x128xf32>
    %8 = arith.maximumf %6, %7 : vector<16x128xf32>
    %9 = arith.truncf %8 : vector<16x128xf32> to vector<16x128xbf16>
    %c32 = arith.constant 32 : index
    %c0_6 = arith.constant 0 : index
    %10 = vector.load %arg2[%c32, %c0_6] : memref<544x128xbf16, #tpu.memory_space<vmem>>, vector<128x128xbf16>
    %11 = vector.extract_strided_slice %0 {offsets = [1, 0], sizes = [1, 128], strides = [1, 1]} : vector<8x128xf32> to vector<1x128xf32>
    %cst_7 = arith.constant dense<0.000000e+00> : vector<16x128xf32>
    %12 = tpu.matmul %9, %10, %cst_7 {dimension_numbers = #tpu.dot_dimension_numbers<[1], [0], [0], [1], [0, 0, 1, 1], [], []>} : vector<16x128xbf16>, vector<128x128xbf16>, vector<16x128xf32> -> vector<16x128xf32>
    %13 = vector.broadcast %11 : vector<1x128xf32> to vector<16x128xf32>
    %14 = arith.addf %12, %13 : vector<16x128xf32>
    %cst_8 = arith.constant 0.000000e+00 : f32
    %15 = vector.broadcast %cst_8 : f32 to vector<16x128xf32>
    %16 = arith.maximumf %14, %15 : vector<16x128xf32>
    %17 = arith.truncf %16 : vector<16x128xf32> to vector<16x128xbf16>
    %c160 = arith.constant 160 : index
    %c0_9 = arith.constant 0 : index
    %18 = vector.load %arg2[%c160, %c0_9] : memref<544x128xbf16, #tpu.memory_space<vmem>>, vector<128x128xbf16>
    %19 = vector.extract_strided_slice %0 {offsets = [2, 0], sizes = [1, 128], strides = [1, 1]} : vector<8x128xf32> to vector<1x128xf32>
    %cst_10 = arith.constant dense<0.000000e+00> : vector<16x128xf32>
    %20 = tpu.matmul %17, %18, %cst_10 {dimension_numbers = #tpu.dot_dimension_numbers<[1], [0], [0], [1], [0, 0, 1, 1], [], []>} : vector<16x128xbf16>, vector<128x128xbf16>, vector<16x128xf32> -> vector<16x128xf32>
    %21 = vector.broadcast %19 : vector<1x128xf32> to vector<16x128xf32>
    %22 = arith.addf %20, %21 : vector<16x128xf32>
    %cst_11 = arith.constant 0.000000e+00 : f32
    %23 = vector.broadcast %cst_11 : f32 to vector<16x128xf32>
    %24 = arith.maximumf %22, %23 : vector<16x128xf32>
    %25 = arith.truncf %24 : vector<16x128xf32> to vector<16x128xbf16>
    %c288 = arith.constant 288 : index
    %c0_12 = arith.constant 0 : index
    %26 = vector.load %arg2[%c288, %c0_12] : memref<544x128xbf16, #tpu.memory_space<vmem>>, vector<128x128xbf16>
    %27 = vector.extract_strided_slice %0 {offsets = [3, 0], sizes = [1, 128], strides = [1, 1]} : vector<8x128xf32> to vector<1x128xf32>
    %cst_13 = arith.constant dense<0.000000e+00> : vector<16x128xf32>
    %28 = tpu.matmul %25, %26, %cst_13 {dimension_numbers = #tpu.dot_dimension_numbers<[1], [0], [0], [1], [0, 0, 1, 1], [], []>} : vector<16x128xbf16>, vector<128x128xbf16>, vector<16x128xf32> -> vector<16x128xf32>
    %29 = vector.broadcast %27 : vector<1x128xf32> to vector<16x128xf32>
    %30 = arith.addf %28, %29 : vector<16x128xf32>
    %cst_14 = arith.constant 0.000000e+00 : f32
    %31 = vector.broadcast %cst_14 : f32 to vector<16x128xf32>
    %32 = arith.maximumf %30, %31 : vector<16x128xf32>
    %33 = arith.truncf %32 : vector<16x128xf32> to vector<16x128xbf16>
    %c416 = arith.constant 416 : index
    %c0_15 = arith.constant 0 : index
    %34 = vector.load %arg2[%c416, %c0_15] : memref<544x128xbf16, #tpu.memory_space<vmem>>, vector<128x128xbf16>
    %35 = vector.extract_strided_slice %0 {offsets = [4, 0], sizes = [1, 128], strides = [1, 1]} : vector<8x128xf32> to vector<1x128xf32>
    %cst_16 = arith.constant dense<0.000000e+00> : vector<16x128xf32>
    %36 = tpu.matmul %33, %34, %cst_16 {dimension_numbers = #tpu.dot_dimension_numbers<[1], [0], [0], [1], [0, 0, 1, 1], [], []>} : vector<16x128xbf16>, vector<128x128xbf16>, vector<16x128xf32> -> vector<16x128xf32>
    %37 = vector.broadcast %35 : vector<1x128xf32> to vector<16x128xf32>
    %38 = arith.addf %36, %37 : vector<16x128xf32>
    %c0_17 = arith.constant 0 : index
    %c0_18 = arith.constant 0 : index
    %39 = vector.load %arg4[%c0_17, %c0_18] : memref<16x128xf32, #tpu.memory_space<vmem>>, vector<16x128xf32>
    tpu.vector_store %arg4[%c0_17, %c0_18], %38 {strides = array<i32>} : memref<16x128xf32, #tpu.memory_space<vmem>>, vector<16x128xf32>,
    return
  }
  func.func @transform_0(%arg0: i32) -> (i32, i32) {
    %c0_i32 = arith.constant 0 : i32
    %c0_i32_0 = arith.constant 0 : i32
    return %arg0, %c0_i32 : i32, i32
  }
  func.func @transform_1(%arg0: i32) -> (i32, i32) {
    %c0_i32 = arith.constant 0 : i32
    %c0_i32_0 = arith.constant 0 : i32
    %c0_i32_1 = arith.constant 0 : i32
    return %c0_i32, %c0_i32_0 : i32, i32
  }
  func.func @transform_2(%arg0: i32) -> (i32, i32) {
    %c0_i32 = arith.constant 0 : i32
    %c0_i32_0 = arith.constant 0 : i32
    %c0_i32_1 = arith.constant 0 : i32
    return %c0_i32, %c0_i32_0 : i32, i32
  }
  func.func @transform_3(%arg0: i32) -> (i32, i32) {
    %c0_i32 = arith.constant 0 : i32
    %c0_i32_0 = arith.constant 0 : i32
    return %arg0, %c0_i32 : i32, i32
  }
}

</mosaic_0001>

<llo_original>
// kernel: direct_predictor_forward.1
$region0: #{direct_predictor_forward.1}
  #allocation0 [shape = 'u32[]', space=smem, size = 0x4, offset = 0x4, fixed_abs, tag = 'smem constant byte address 0x4 - core index']
  #allocation1 [shape = 'u32[72,128]{1,0:T(1,128)}', space=vmem, size = 0x9000, scoped, tag = 'internal scratch']
  %s0 = inlined_call_operand.vmem [shape: bf16[16,32], index: 0, kind: input, shape index: {}]
  %s1 = inlined_call_operand.hbm [shape: bf16[544,128], index: 1, kind: input, shape index: {}]
  %s2 = inlined_call_operand.vmem [shape: f32[8,128], index: 2, kind: input, shape index: {}]
  %s3 = inlined_call_operand.vmem [shape: f32[16,128], index: 3, kind: output, shape index: {}]
  %s4 = sld [smem:[#allocation0]]
  $region26: #{direct_predictor_forward.1} parent=0
    _
  %s6 = ssub.s32 1, %s4
  %s7 = scalar_select 0, %s6, %s4
  $region1: #{direct_predictor_forward.1} parent=0
    #allocation2 [shape = 'u8[139264]{0}', space=vmem, size = 0x22000, scoped, tag = 'input window, operand 1, single buffered']
    #allocation3 [shape = 's32[1]{0}', space=sflag, size = 0x4, scoped, tag = 'scoped memory for direct_predictor_forward.1']
    %8 = vsyncpa [#allocation3], 0
    // Predicated region
    $region2: #{direct_predictor_forward.1} parent=1 // pred_check
      _
    $region3: #{direct_predictor_forward.1} parent=1 // pred_check_branch
      %10 = sbr.rel (0) target = $region5
    $region4: #{direct_predictor_forward.1} parent=1 // pred_region
      _
    $region5: #{direct_predictor_forward.1} parent=1 // pred_fallthru
      _
    // Predicated region
    $region6: #{direct_predictor_forward.1} parent=1 // pred_check
      _
    $region7: #{direct_predictor_forward.1} parent=1 // pred_check_branch
      %12 = sbr.rel (0) target = $region9
    $region8: #{direct_predictor_forward.1} parent=1 // pred_region
      %14 = vsyncadd [#allocation3], 0
      %s15 = sshll.u32 %s1, 4
      %s16 = int_to_ptr.hbm [resolvable:$true] %s15
      %s17 = sshll.u32 [#allocation2], 4
      %s18 = int_to_ptr.vmem [resolvable:$true] %s17
      %23 = dma.hbm_to_vmem [thread:$0]  %s16, 4352, %s18, [#allocation3], 64, 64, 4
    $region9: #{direct_predictor_forward.1} parent=1 // pred_fallthru
      _
    // Predicated region
    $region10: #{direct_predictor_forward.1} parent=1 // pred_check
      _
    $region11: #{direct_predictor_forward.1} parent=1 // pred_check_branch
      %25 = sbr.rel (0) target = $region13
    $region12: #{direct_predictor_forward.1} parent=1 // pred_region
      _
    $region13: #{direct_predictor_forward.1} parent=1 // pred_fallthru
      _
    // Predicated region
    $region14: #{direct_predictor_forward.1} parent=1 // pred_check
      _
    $region15: #{direct_predictor_forward.1} parent=1 // pred_check_branch
      %27 = sbr.rel (0) target = $region17
    $region16: #{direct_predictor_forward.1} parent=1 // pred_region
      %29 = dma.done [#allocation3], 4352
    $region17: #{direct_predictor_forward.1} parent=1 // pred_fallthru
      _
    %v31 = vld [vmem:[%s2] sm:$0xff]
    %v32 = vld [vmem:[%s0] sm:$0xf]
    %v33 = vld [vmem:[%s0 + $0x4] sm:$0xf]
    %v34 = vld [vmem:[#allocation2] sm:$0xf]
    %v35 = vld [vmem:[#allocation2 + $0x4] sm:$0xf]
    %v36 = vld [vmem:[#allocation2 + $0x8] sm:$0xf]
    %v37 = vld [vmem:[#allocation2 + $0xc] sm:$0xf]
    %v38 = vperm.slane %v31, 0
    %v41 = vunpack.c.l.b16 %v32
    %v42 = vunpack.c.l.b16 %v33
    %v43 = vpack.c.b16 %v42, %v41
    %v48 = vunpack.c.l.b16 %v34
    %v49 = vunpack.c.l.b16 %v35
    %v50 = vunpack.c.l.b16 %v36
    %v51 = vunpack.c.l.b16 %v37
    %v52 = vpack.c.b16 %v49, %v48
    %v53 = vpack.c.b16 %v51, %v50
    %vm56 = vcmask 261120
    %v58 = vsel %vm56, %v43, 0
    %60 = vmatpush.bf16.msra.mxu0 0
    %61 = vmatpush.bf16.msra.mxu0 0
    %62 = vmatpush.bf16.msra.mxu0 0
    %63 = vmatpush.bf16.msra.mxu0 0
    %64 = vmatpush.bf16.msra.mxu0 0
    %65 = vmatpush.bf16.msra.mxu0 0
    %66 = vmatpush.bf16.msra.mxu0 %v53
    %67 = vmatpush.bf16.msra.mxu0 %v52
    %68 = vmatmul.bf16.gmra.mxu0 %v58
    %v69 = vpop.f32.mrf.mxu0
    %v70 = vadd.f32 %v38, %v69
    %v71 = vpop.f32.mrf.mxu0
    %v72 = vadd.f32 %v38, %v71
    %73 = vdwg.mxu0
    %v74 = vmax.f32 %v70, 0.0
    %v75 = vmax.f32 %v72, 0.0
    %v76 = vpack.c.bf16 %v75, %v74
    %v77 = vld [vmem:[#allocation2 + $0x10] sm:$0xf]
    %v78 = vld [vmem:[#allocation2 + $0x14] sm:$0xf]
    %v79 = vld [vmem:[#allocation2 + $0x18] sm:$0xf]
    %v80 = vld [vmem:[#allocation2 + $0x1c] sm:$0xf]
    %v81 = vld [vmem:[#allocation2 + $0x20] sm:$0xf]
    %v82 = vld [vmem:[#allocation2 + $0x24] sm:$0xf]
    %v83 = vld [vmem:[#allocation2 + $0x28] sm:$0xf]
    %v84 = vld [vmem:[#allocation2 + $0x2c] sm:$0xf]
    %v85 = vld [vmem:[#allocation2 + $0x30] sm:$0xf]
    %v86 = vld [vmem:[#allocation2 + $0x34] sm:$0xf]
    %v87 = vld [vmem:[#allocation2 + $0x38] sm:$0xf]
    %v88 = vld [vmem:[#allocation2 + $0x3c] sm:$0xf]
    %v89 = vld [vmem:[#allocation2 + $0x40] sm:$0xf]
    %v90 = vld [vmem:[#allocation2 + $0x44] sm:$0xf]
    %v91 = vld [vmem:[#allocation2 + $0x48] sm:$0xf]
    %v92 = vld [vmem:[#allocation2 + $0x4c] sm:$0xf]
    %v93 = vperm.slane %v31, 1
    %v110 = vunpack.c.l.b16 %v77
    %v111 = vunpack.c.l.b16 %v78
    %v112 = vunpack.c.l.b16 %v79
    %v113 = vunpack.c.l.b16 %v80
    %v114 = vunpack.c.l.b16 %v81
    %v115 = vunpack.c.l.b16 %v82
    %v116 = vunpack.c.l.b16 %v83
    %v117 = vunpack.c.l.b16 %v84
    %v118 = vunpack.c.l.b16 %v85
    %v119 = vunpack.c.l.b16 %v86
    %v120 = vunpack.c.l.b16 %v87
    %v121 = vunpack.c.l.b16 %v88
    %v122 = vunpack.c.l.b16 %v89
    %v123 = vunpack.c.l.b16 %v90
    %v124 = vunpack.c.l.b16 %v91
    %v125 = vunpack.c.l.b16 %v92
    %v126 = vpack.c.b16 %v111, %v110
    %v127 = vpack.c.b16 %v113, %v112
    %v128 = vpack.c.b16 %v115, %v114
    %v129 = vpack.c.b16 %v117, %v116
    %v130 = vpack.c.b16 %v119, %v118
    %v131 = vpack.c.b16 %v121, %v120
    %v132 = vpack.c.b16 %v123, %v122
    %v133 = vpack.c.b16 %v125, %v124
    %142 = vmatpush.bf16.msra.mxu0 %v133
    %143 = vmatpush.bf16.msra.mxu0 %v132
    %144 = vmatpush.bf16.msra.mxu0 %v131
    %145 = vmatpush.bf16.msra.mxu0 %v130
    %146 = vmatpush.bf16.msra.mxu0 %v129
    %147 = vmatpush.bf16.msra.mxu0 %v128
    %148 = vmatpush.bf16.msra.mxu0 %v127
    %149 = vmatpush.bf16.msra.mxu0 %v126
    %150 = vmatmul.bf16.gmra.mxu0 %v76
    %v151 = vpop.f32.mrf.mxu0
    %v152 = vadd.f32 %v93, %v151
    %v153 = vpop.f32.mrf.mxu0
    %v154 = vadd.f32 %v93, %v153
    %155 = vdwg.mxu0
    %v156 = vmax.f32 %v152, 0.0
    %v157 = vmax.f32 %v154, 0.0
    %v158 = vpack.c.bf16 %v157, %v156
    %v159 = vld [vmem:[#allocation2 + $0x50] sm:$0xf]
    %v160 = vld [vmem:[#allocation2 + $0x54] sm:$0xf]
    %v161 = vld [vmem:[#allocation2 + $0x58] sm:$0xf]
    %v162 = vld [vmem:[#allocation2 + $0x5c] sm:$0xf]
    %v163 = vld [vmem:[#allocation2 + $0x60] sm:$0xf]
    %v164 = vld [vmem:[#allocation2 + $0x64] sm:$0xf]
    %v165 = vld [vmem:[#allocation2 + $0x68] sm:$0xf]
    %v166 = vld [vmem:[#allocation2 + $0x6c] sm:$0xf]
    %v167 = vld [vmem:[#allocation2 + $0x70] sm:$0xf]
    %v168 = vld [vmem:[#allocation2 + $0x74] sm:$0xf]
    %v169 = vld [vmem:[#allocation2 + $0x78] sm:$0xf]
    %v170 = vld [vmem:[#allocation2 + $0x7c] sm:$0xf]
    %v171 = vld [vmem:[#allocation2 + $0x80] sm:$0xf]
    %v172 = vld [vmem:[#allocation2 + $0x84] sm:$0xf]
    %v173 = vld [vmem:[#allocation2 + $0x88] sm:$0xf]
    %v174 = vld [vmem:[#allocation2 + $0x8c] sm:$0xf]
    %v175 = vperm.slane %v31, 2
    %v192 = vunpack.c.l.b16 %v159
    %v193 = vunpack.c.l.b16 %v160
    %v194 = vunpack.c.l.b16 %v161
    %v195 = vunpack.c.l.b16 %v162
    %v196 = vunpack.c.l.b16 %v163
    %v197 = vunpack.c.l.b16 %v164
    %v198 = vunpack.c.l.b16 %v165
    %v199 = vunpack.c.l.b16 %v166
    %v200 = vunpack.c.l.b16 %v167
    %v201 = vunpack.c.l.b16 %v168
    %v202 = vunpack.c.l.b16 %v169
    %v203 = vunpack.c.l.b16 %v170
    %v204 = vunpack.c.l.b16 %v171
    %v205 = vunpack.c.l.b16 %v172
    %v206 = vunpack.c.l.b16 %v173
    %v207 = vunpack.c.l.b16 %v174
    %v208 = vpack.c.b16 %v193, %v192
    %v209 = vpack.c.b16 %v195, %v194
    %v210 = vpack.c.b16 %v197, %v196
    %v211 = vpack.c.b16 %v199, %v198
    %v212 = vpack.c.b16 %v201, %v200
    %v213 = vpack.c.b16 %v203, %v202
    %v214 = vpack.c.b16 %v205, %v204
    %v215 = vpack.c.b16 %v207, %v206
    %224 = vmatpush.bf16.msra.mxu0 %v215
    %225 = vmatpush.bf16.msra.mxu0 %v214
    %226 = vmatpush.bf16.msra.mxu0 %v213
    %227 = vmatpush.bf16.msra.mxu0 %v212
    %228 = vmatpush.bf16.msra.mxu0 %v211
    %229 = vmatpush.bf16.msra.mxu0 %v210
    %230 = vmatpush.bf16.msra.mxu0 %v209
    %231 = vmatpush.bf16.msra.mxu0 %v208
    %232 = vmatmul.bf16.gmra.mxu0 %v158
    %v233 = vpop.f32.mrf.mxu0
    %v234 = vadd.f32 %v175, %v233
    %v235 = vpop.f32.mrf.mxu0
    %v236 = vadd.f32 %v175, %v235
    %237 = vdwg.mxu0
    %v238 = vmax.f32 %v234, 0.0
    %v239 = vmax.f32 %v236, 0.0
    %v240 = vpack.c.bf16 %v239, %v238
    %v241 = vld [vmem:[#allocation2 + $0x90] sm:$0xf]
    %v242 = vld [vmem:[#allocation2 + $0x94] sm:$0xf]
    %v243 = vld [vmem:[#allocation2 + $0x98] sm:$0xf]
    %v244 = vld [vmem:[#allocation2 + $0x9c] sm:$0xf]
    %v245 = vld [vmem:[#allocation2 + $0xa0] sm:$0xf]
    %v246 = vld [vmem:[#allocation2 + $0xa4] sm:$0xf]
    %v247 = vld [vmem:[#allocation2 + $0xa8] sm:$0xf]
    %v248 = vld [vmem:[#allocation2 + $0xac] sm:$0xf]
    %v249 = vld [vmem:[#allocation2 + $0xb0] sm:$0xf]
    %v250 = vld [vmem:[#allocation2 + $0xb4] sm:$0xf]
    %v251 = vld [vmem:[#allocation2 + $0xb8] sm:$0xf]
    %v252 = vld [vmem:[#allocation2 + $0xbc] sm:$0xf]
    %v253 = vld [vmem:[#allocation2 + $0xc0] sm:$0xf]
    %v254 = vld [vmem:[#allocation2 + $0xc4] sm:$0xf]
    %v255 = vld [vmem:[#allocation2 + $0xc8] sm:$0xf]
    %v256 = vld [vmem:[#allocation2 + $0xcc] sm:$0xf]
    %v257 = vperm.slane %v31, 3
    %v274 = vunpack.c.l.b16 %v241
    %v275 = vunpack.c.l.b16 %v242
    %v276 = vunpack.c.l.b16 %v243
    %v277 = vunpack.c.l.b16 %v244
    %v278 = vunpack.c.l.b16 %v245
    %v279 = vunpack.c.l.b16 %v246
    %v280 = vunpack.c.l.b16 %v247
    %v281 = vunpack.c.l.b16 %v248
    %v282 = vunpack.c.l.b16 %v249
    %v283 = vunpack.c.l.b16 %v250
    %v284 = vunpack.c.l.b16 %v251
    %v285 = vunpack.c.l.b16 %v252
    %v286 = vunpack.c.l.b16 %v253
    %v287 = vunpack.c.l.b16 %v254
    %v288 = vunpack.c.l.b16 %v255
    %v289 = vunpack.c.l.b16 %v256
    %v290 = vpack.c.b16 %v275, %v274
    %v291 = vpack.c.b16 %v277, %v276
    %v292 = vpack.c.b16 %v279, %v278
    %v293 = vpack.c.b16 %v281, %v280
    %v294 = vpack.c.b16 %v283, %v282
    %v295 = vpack.c.b16 %v285, %v284
    %v296 = vpack.c.b16 %v287, %v286
    %v297 = vpack.c.b16 %v289, %v288
    %306 = vmatpush.bf16.msra.mxu0 %v297
    %307 = vmatpush.bf16.msra.mxu0 %v296
    %308 = vmatpush.bf16.msra.mxu0 %v295
    %309 = vmatpush.bf16.msra.mxu0 %v294
    %310 = vmatpush.bf16.msra.mxu0 %v293
    %311 = vmatpush.bf16.msra.mxu0 %v292
    %312 = vmatpush.bf16.msra.mxu0 %v291
    %313 = vmatpush.bf16.msra.mxu0 %v290
    %314 = vmatmul.bf16.gmra.mxu0 %v240
    %v315 = vpop.f32.mrf.mxu0
    %v316 = vadd.f32 %v257, %v315
    %v317 = vpop.f32.mrf.mxu0
    %v318 = vadd.f32 %v257, %v317
    %319 = vdwg.mxu0
    %v320 = vmax.f32 %v316, 0.0
    %v321 = vmax.f32 %v318, 0.0
    %v322 = vpack.c.bf16 %v321, %v320
    %v323 = vld [vmem:[#allocation2 + $0xd0] sm:$0xf]
    %v324 = vld [vmem:[#allocation2 + $0xd4] sm:$0xf]
    %v325 = vld [vmem:[#allocation2 + $0xd8] sm:$0xf]
    %v326 = vld [vmem:[#allocation2 + $0xdc] sm:$0xf]
    %v327 = vld [vmem:[#allocation2 + $0xe0] sm:$0xf]
    %v328 = vld [vmem:[#allocation2 + $0xe4] sm:$0xf]
    %v329 = vld [vmem:[#allocation2 + $0xe8] sm:$0xf]
    %v330 = vld [vmem:[#allocation2 + $0xec] sm:$0xf]
    %v331 = vld [vmem:[#allocation2 + $0xf0] sm:$0xf]
    %v332 = vld [vmem:[#allocation2 + $0xf4] sm:$0xf]
    %v333 = vld [vmem:[#allocation2 + $0xf8] sm:$0xf]
    %v334 = vld [vmem:[#allocation2 + $0xfc] sm:$0xf]
    %v335 = vld [vmem:[#allocation2 + $0x100] sm:$0xf]
    %v336 = vld [vmem:[#allocation2 + $0x104] sm:$0xf]
    %v337 = vld [vmem:[#allocation2 + $0x108] sm:$0xf]
    %v338 = vld [vmem:[#allocation2 + $0x10c] sm:$0xf]
    %v339 = vperm.slane %v31, 4
    %v356 = vunpack.c.l.b16 %v323
    %v357 = vunpack.c.l.b16 %v324
    %v358 = vunpack.c.l.b16 %v325
    %v359 = vunpack.c.l.b16 %v326
    %v360 = vunpack.c.l.b16 %v327
    %v361 = vunpack.c.l.b16 %v328
    %v362 = vunpack.c.l.b16 %v329
    %v363 = vunpack.c.l.b16 %v330
    %v364 = vunpack.c.l.b16 %v331
    %v365 = vunpack.c.l.b16 %v332
    %v366 = vunpack.c.l.b16 %v333
    %v367 = vunpack.c.l.b16 %v334
    %v368 = vunpack.c.l.b16 %v335
    %v369 = vunpack.c.l.b16 %v336
    %v370 = vunpack.c.l.b16 %v337
    %v371 = vunpack.c.l.b16 %v338
    %v372 = vpack.c.b16 %v357, %v356
    %v373 = vpack.c.b16 %v359, %v358
    %v374 = vpack.c.b16 %v361, %v360
    %v375 = vpack.c.b16 %v363, %v362
    %v376 = vpack.c.b16 %v365, %v364
    %v377 = vpack.c.b16 %v367, %v366
    %v378 = vpack.c.b16 %v369, %v368
    %v379 = vpack.c.b16 %v371, %v370
    %388 = vmatpush.bf16.msra.mxu0 %v379
    %389 = vmatpush.bf16.msra.mxu0 %v378
    %390 = vmatpush.bf16.msra.mxu0 %v377
    %391 = vmatpush.bf16.msra.mxu0 %v376
    %392 = vmatpush.bf16.msra.mxu0 %v375
    %393 = vmatpush.bf16.msra.mxu0 %v374
    %394 = vmatpush.bf16.msra.mxu0 %v373
    %395 = vmatpush.bf16.msra.mxu0 %v372
    %396 = vmatmul.bf16.gmra.mxu0 %v322
    %v397 = vpop.f32.mrf.mxu0
    %v398 = vadd.f32 %v339, %v397
    %v399 = vpop.f32.mrf.mxu0
    %v400 = vadd.f32 %v339, %v399
    %401 = vdwg.mxu0
    %402 = vst [vmem:[%s3] sm:$0xff] %v398
    %403 = vst [vmem:[%s3 + $0x8] sm:$0xff] %v400
    // Predicated region
    $region18: #{direct_predictor_forward.1} parent=1 // pred_check
      _
    $region19: #{direct_predictor_forward.1} parent=1 // pred_check_branch
      %405 = sbr.rel (0) target = $region21
    $region20: #{direct_predictor_forward.1} parent=1 // pred_region
      _
    $region21: #{direct_predictor_forward.1} parent=1 // pred_fallthru
      _
    // Predicated region
    $region22: #{direct_predictor_forward.1} parent=1 // pred_check
      _
    $region23: #{direct_predictor_forward.1} parent=1 // pred_check_branch
      %407 = sbr.rel (0) target = $region25
    $region24: #{direct_predictor_forward.1} parent=1 // pred_region
      _
    $region25: #{direct_predictor_forward.1} parent=1 // pred_fallthru
      _
    %408 = vsyncpa [#allocation3], 1

</llo_original>
